<compile_context>
chip_gen: v6e
topology: v6e:2x2x1
jax: 0.10.0
libtpu: 0.0.40
codegen_flags: <defaults>
</compile_context>

<pallas_src>
import functools

import numpy as np

import jax
import jax.numpy as jnp
from jax.experimental import pallas as pl
from jax.experimental.pallas import tpu as pltpu


# ----------------------------- Pass 1: conv + ReLU + partial BN stats --------

def _conv_relu_stats_kernel(xe_ref, w_ref, mask_ref, y_ref, stats_ref, patch_ref,
                            *, W, cin_p):
    """3x3 conv (stride 1, pad 1) + ReLU for one image, plus masked per-channel
    partial sums for the BatchNorm statistics.

    xe_ref:    (1, Cin_p, Lp)   bf16  zero-padded, row-flattened, halo-extended input
    w_ref:     (Cout, 9*Cin_p)  bf16  conv weight with the 9 taps folded into K
    mask_ref:  (1, L)           f32   1.0 on valid output positions of the padded frame
    y_ref:     (1, Cout, L)     bf16  conv+ReLU output on the padded frame (lane-dense)
    stats_ref: (1, Cout, 2)     f32   packed per-image partial [sum, sum-of-squares]
    patch_ref: (9*Cin_p, L)     bf16  VMEM scratch holding the im2col patch
    """
    Wp = W + 2                      # padded frame width
    L = y_ref.shape[2]              # (H+2)*(W+2) positions per image
    off0 = W + 3                    # extra halo padding on the flattened axis

    xe = xe_ref[0]                  # (Cin_p, Lp) bf16

    # im2col directly in bf16: each tap is a static lane-offset slice of the
    # once-padded flat frame, written into the VMEM scratch (no concatenate temp,
    # no f32->bf16 cast copy).  Stacked along K -> ONE MXU matmul with K = 9*Cin_p.
    for kh in range(3):
        for kw in range(3):
            t = kh * 3 + kw
            d = (kh - 1) * Wp + (kw - 1)
            patch_ref[t * cin_p:(t + 1) * cin_p, :] = xe[:, off0 + d: off0 + d + L]

    # bf16 operands at the MXU boundary, f32 accumulation.
    y = jnp.dot(w_ref[...], patch_ref[...],
                preferred_element_type=jnp.float32)              # (Cout, L) f32
    y = jnp.maximum(y, 0.0)                                      # ReLU (f32, VPU)
    y_ref[0] = y.astype(jnp.bfloat16)                            # lane-dense bf16 store

    # Per-image PARTIAL statistics from the f32 accumulator (halo masked out),
    # packed into one tiny output block.  No resident accumulator -> the batch
    # grid axis stays 'parallel' (v7x megacore).
    ym = y * mask_ref[...]                                       # (Cout, L)
    s = jnp.sum(ym, axis=1, keepdims=True)                       # (Cout, 1)
    ss = jnp.sum(ym * y, axis=1, keepdims=True)                  # (Cout, 1)
    stats_ref[0] = jnp.concatenate([s, ss], axis=1)              # (Cout, 2)


# ----------------------------- Pass 2: fused BN affine + halo crop -----------

def _bn_affine_crop_kernel(y_ref, sel_ref, a_ref, b_ref, o_ref):
    """o = (y @ sel) * a + b.

    y_ref:   (tr, L)    bf16  conv+ReLU rows on the padded frame
    sel_ref: (L, H*W)   bf16  constant one-hot column-selection matrix (halo crop)
    a_ref:   (tr, 1)    f32   per-row (= per-channel) BN scale
    b_ref:   (tr, 1)    f32   per-row (= per-channel) BN shift
    o_ref:   (tr, H*W)  f32   normalized output; lane-dense, == NCHW when reshaped
    """
    yv = jnp.dot(y_ref[...], sel_ref[...],
                 preferred_element_type=jnp.float32)   # exact column gather on the MXU
    o_ref[...] = yv * a_ref[...] + b_ref[...]


# ----------------------------- VMEM budget helpers -----------------------------

_DEFAULT_SCOPED_VMEM = 32 * 1024 * 1024


def _vmem_capacity_bytes():
    try:
        return int(pltpu.get_tpu_info().vmem_capacity_bytes)
    except Exception:
        return 64 * 1024 * 1024     # assume the smallest generation (v7x) if query fails


def _compiler_params(need_bytes, semantics):
    # Only raise the scoped-VMEM limit when the working set actually needs it
    # (never floor it below the platform default), capped generation-aware at
    # half the physical capacity (~32 MiB on v7x, ~64 MiB on v5e/v6e).
    limit = None
    if need_bytes + (4 << 20) > _DEFAULT_SCOPED_VMEM:
        limit = int(min(need_bytes + (8 << 20), _vmem_capacity_bytes() // 2))
    return pltpu.CompilerParams(dimension_semantics=semantics,
                                vmem_limit_bytes=limit)


# ----------------------------- Wrapper ---------------------------------------

def conv_block_forward(x_nchw, w_oihw, gamma, beta, eps=1e-5):
    """Forward of ConvBlock. x_nchw: (N, C_in, H, W) float32. Returns (N, C_out, H, W) f32."""
    N, Cin, H, W = x_nchw.shape
    Cout = w_oihw.shape[0]
    Hp, Wp = H + 2, W + 2
    L = Hp * Wp                       # padded-frame positions per image
    HW = H * W
    halo = W + 3                      # max |tap offset| along the flattened axis
    Lp = L + 2 * halo
    cin_p = ((Cin + 7) // 8) * 8      # sublane-align the tap slabs (zero K rows are free)

    # ---- glue (plain JAX): channel pad, zero ring, flatten rows, halo pad, bf16.
    xp = jnp.pad(x_nchw.astype(jnp.float32),
                 ((0, 0), (0, cin_p - Cin), (1, 1), (1, 1)))
    xe = jnp.pad(xp.reshape(N, cin_p, L), ((0, 0), (0, 0), (halo, halo)))
    xe = xe.astype(jnp.bfloat16)                                   # (N, cin_p, Lp)
    # (Cout, Cin, 3, 3) -> pad Cin -> (Cout, 3, 3, cin_p) -> (Cout, 9*cin_p); row order
    # matches the tap loop in the kernel.
    w2 = jnp.pad(w_oihw.astype(jnp.float32),
                 ((0, 0), (0, cin_p - Cin), (0, 0), (0, 0)))
    w2 = jnp.transpose(w2, (0, 2, 3, 1)).reshape(Cout, 9 * cin_p).astype(jnp.bfloat16)

    # Compile-time constants: validity mask of the padded frame (BN stats) and the
    # one-hot (L, H*W) selection matrix that crops the halo on the MXU in pass 2.
    q = np.arange(HW)
    flat_valid = (q // W + 1) * Wp + (q % W + 1)                   # padded-frame index
    mask_np = np.zeros((1, L), np.float32)
    mask_np[0, flat_valid] = 1.0
    mask = jnp.asarray(mask_np)
    sel_np = np.zeros((L, HW), np.float32)
    sel_np[flat_valid, q] = 1.0
    sel = jnp.asarray(sel_np, dtype=jnp.bfloat16)

    # ---- pass 1: conv + ReLU + packed per-image partial stats; batch axis parallel.
    need1 = (2 * (cin_p * Lp * 2 + Cout * 9 * cin_p * 2 + L * 4
                  + Cout * L * 2 + Cout * 2 * 4)
             + 9 * cin_p * L * 2)                                  # inputs/outputs x2 + scratch
    y, stats = pl.pallas_call(
        functools.partial(_conv_relu_stats_kernel, W=W, cin_p=cin_p),
        out_shape=(
            jax.ShapeDtypeStruct((N, Cout, L), jnp.bfloat16),
            jax.ShapeDtypeStruct((N, Cout, 2), jnp.float32),
        ),
        grid_spec=pltpu.PrefetchScalarGridSpec(
            num_scalar_prefetch=0,
            grid=(N,),
            in_specs=[
                pl.BlockSpec((1, cin_p, Lp), lambda n: (n, 0, 0)),
                pl.BlockSpec((Cout, 9 * cin_p), lambda n: (0, 0)),
                pl.BlockSpec((1, L), lambda n: (0, 0)),
            ],
            out_specs=[
                pl.BlockSpec((1, Cout, L), lambda n: (n, 0, 0)),
                pl.BlockSpec((1, Cout, 2), lambda n: (n, 0, 0)),
            ],
            scratch_shapes=[pltpu.VMEM((9 * cin_p, L), jnp.bfloat16)],
        ),
        compiler_params=_compiler_params(need1, ("parallel",)),
    )(xe, w2, mask)

    # ---- tiny JAX glue: reduce partial sums, fold BN into one scale/shift.
    count = float(N * H * W)
    mean = jnp.sum(stats[:, :, 0], axis=0) / count                 # (Cout,)
    var = jnp.sum(stats[:, :, 1], axis=0) / count - mean * mean    # biased (training BN)
    inv = jax.lax.rsqrt(var + eps)
    scale = inv * gamma.astype(jnp.float32)                        # (Cout,)
    shift = beta.astype(jnp.float32) - mean * scale                # (Cout,)

    # ---- pass 2: fused (halo crop + scale + shift); row tile from a VMEM byte budget.
    rows = N * Cout
    sel_block = L * HW * 2                              # bf16 selection matrix
    per_row = 2 * (2 * L + 4 * HW + 8)                  # y(bf16)+out(f32)+a,b, double-buffered
    budget = 12 * 2 ** 20                               # conservative: fits every generation
    tr = int(min(rows, max(8, (budget - 2 * sel_block) // per_row)))
    if rows >= 8:
        tr = max(8, (tr // 8) * 8)
    rows_p = ((rows + tr - 1) // tr) * tr

    yf = y.reshape(rows, L)
    a = jnp.tile(scale, N)
    b = jnp.tile(shift, N)
    if rows_p != rows:
        yf = jnp.pad(yf, ((0, rows_p - rows), (0, 0)))
        a = jnp.pad(a, (0, rows_p - rows))
        b = jnp.pad(b, (0, rows_p - rows))
    a = a.reshape(rows_p, 1)
    b = b.reshape(rows_p, 1)

    need2 = 2 * (tr * L * 2 + sel_block + 2 * tr * 4 + tr * HW * 4)
    out_flat = pl.pallas_call(
        _bn_affine_crop_kernel,
        out_shape=jax.ShapeDtypeStruct((rows_p, HW), jnp.float32),
        grid_spec=pltpu.PrefetchScalarGridSpec(
            num_scalar_prefetch=0,
            grid=(rows_p // tr,),
            in_specs=[
                pl.BlockSpec((tr, L), lambda g: (g, 0)),
                pl.BlockSpec((L, HW), lambda g: (0, 0)),
                pl.BlockSpec((tr, 1), lambda g: (g, 0)),
                pl.BlockSpec((tr, 1), lambda g: (g, 0)),
            ],
            out_specs=pl.BlockSpec((tr, HW), lambda g: (g, 0)),
        ),
        compiler_params=_compiler_params(need2, ("parallel",)),
    )(yf, sel, a, b)

    # ---- output is already cropped, channel-major and contiguous: reshape is free.
    return out_flat[:rows].reshape(N, Cout, H, W)


# ----------------------------- Reference (plain JAX) --------------------------

def conv_block_reference(x_nchw, w_oihw, gamma, beta, eps=1e-5,
                         conv_dtype=jnp.float32, y_round_dtype=None):
    x = jnp.transpose(x_nchw, (0, 2, 3, 1)).astype(conv_dtype)
    w = jnp.transpose(w_oihw, (2, 3, 1, 0)).astype(conv_dtype)
    y = jax.lax.conv_general_dilated(
        x, w, window_strides=(1, 1), padding="SAME",
        dimension_numbers=("NHWC", "HWIO", "NHWC"),
        preferred_element_type=jnp.float32)
    y = jnp.maximum(y, 0.0)
    mean = jnp.mean(y, axis=(0, 1, 2))
    var = jnp.mean((y - mean) ** 2, axis=(0, 1, 2))   # biased, training-mode BN
    if y_round_dtype is not None:                      # mimic the kernel's bf16 intermediate
        y = y.astype(y_round_dtype).astype(jnp.float32)
    out = (y - mean) * jax.lax.rsqrt(var + eps) * gamma + beta
    return jnp.transpose(out, (0, 3, 1, 2))


if __name__ == "__main__":
    key = jax.random.PRNGKey(0)
    k_x, k_w = jax.random.split(key)

    N, C_IN, C_OUT, H, W = 2, 4, 8, 16, 16

    x = jax.random.normal(k_x, (N, C_IN, H, W), dtype=jnp.float32)
    # Deterministic synthetic conv weight, PyTorch layout (C_out, C_in, 3, 3).
    w = 0.1 * jax.random.normal(k_w, (C_OUT, C_IN, 3, 3), dtype=jnp.float32)
    gamma = jnp.ones((C_OUT,), jnp.float32)   # BatchNorm2d weight init
    beta = jnp.zeros((C_OUT,), jnp.float32)   # BatchNorm2d bias init

    out = jax.block_until_ready(conv_block_forward(x, w, gamma, beta))
    assert out.shape == (N, C_OUT, H, W)

    # Check against a reference matched to the kernel's numerics (bf16 conv operands,
    # bf16 y intermediate, f32 statistics).
    ref_bf16 = jax.block_until_ready(conv_block_reference(
        x, w, gamma, beta, conv_dtype=jnp.bfloat16, y_round_dtype=jnp.bfloat16))
    err_bf16 = float(jnp.max(jnp.abs(out - ref_bf16)))
    assert err_bf16 < 2e-2, f"bf16-matched reference mismatch: {err_bf16}"

    # Loose check against the exact-f32 (PyTorch-semantics) reference; the gap is only
    # the bf16 rounding of the conv operands / intermediate.
    ref_f32 = jax.block_until_ready(conv_block_reference(x, w, gamma, beta))
    err_f32 = float(jnp.max(jnp.abs(out - ref_f32)))
    assert err_f32 < 1.5e-1, f"f32 reference mismatch: {err_f32}"

    print("KERNEL_OK")
</pallas_src>

<mosaic_0001>
module attributes {stable_mosaic.version = 11 : i64} {
  func.func @_conv_relu_stats_kernel(%arg0: i32, %arg1: memref<1x8x362xbf16, #tpu.memory_space<vmem>>, %arg2: memref<8x72xbf16, #tpu.memory_space<vmem>>, %arg3: memref<1x324xf32, #tpu.memory_space<vmem>>, %arg4: memref<1x8x324xbf16, #tpu.memory_space<vmem>>, %arg5: memref<1x8x2xf32, #tpu.memory_space<vmem>>, %arg6: memref<72x324xbf16, #tpu.memory_space<vmem>>) attributes {dimension_semantics = [#tpu.dimension_semantics<parallel>], iteration_bounds = array<i64: 2>, scalar_prefetch = 0 : i64, scratch_operands = 1 : i64, tpu.core_type = #tpu.core_type<tc>, window_params = [{transform_indices = @transform_0, window_bounds = array<i64: 1, 8, 362>}, {pipeline_mode = #tpu.pipeline_mode<synchronous>, transform_indices = @transform_1, window_bounds = array<i64: 8, 72>}, {pipeline_mode = #tpu.pipeline_mode<synchronous>, transform_indices = @transform_2, window_bounds = array<i64: 1, 324>}, {transform_indices = @transform_3, window_bounds = array<i64: 1, 8, 324>}, {transform_indices = @transform_4, window_bounds = array<i64: 1, 8, 2>}]} {
    %c0 = arith.constant 0 : index
    %c0_0 = arith.constant 0 : index
    %c0_1 = arith.constant 0 : index
    %0 = vector.load %arg1[%c0, %c0_0, %c0_1] : memref<1x8x362xbf16, #tpu.memory_space<vmem>>, vector<1x8x362xbf16>
    %1 = vector.shape_cast %0 : vector<1x8x362xbf16> to vector<8x362xbf16>
    %2 = vector.extract_strided_slice %1 {offsets = [0, 0], sizes = [8, 324], strides = [1, 1]} : vector<8x362xbf16> to vector<8x324xbf16>
    %c0_2 = arith.constant 0 : index
    %c0_3 = arith.constant 0 : index
    %3 = vector.load %arg6[%c0_2, %c0_3] : memref<72x324xbf16, #tpu.memory_space<vmem>>, vector<8x324xbf16>
    tpu.vector_store %arg6[%c0_2, %c0_3], %2 {strides = array<i32>} : memref<72x324xbf16, #tpu.memory_space<vmem>>, vector<8x324xbf16>,
    %4 = vector.extract_strided_slice %1 {offsets = [0, 1], sizes = [8, 324], strides = [1, 1]} : vector<8x362xbf16> to vector<8x324xbf16>
    %c8 = arith.constant 8 : index
    %c0_4 = arith.constant 0 : index
    %5 = vector.load %arg6[%c8, %c0_4] : memref<72x324xbf16, #tpu.memory_space<vmem>>, vector<8x324xbf16>
    tpu.vector_store %arg6[%c8, %c0_4], %4 {strides = array<i32>} : memref<72x324xbf16, #tpu.memory_space<vmem>>, vector<8x324xbf16>,
    %6 = vector.extract_strided_slice %1 {offsets = [0, 2], sizes = [8, 324], strides = [1, 1]} : vector<8x362xbf16> to vector<8x324xbf16>
    %c16 = arith.constant 16 : index
    %c0_5 = arith.constant 0 : index
    %7 = vector.load %arg6[%c16, %c0_5] : memref<72x324xbf16, #tpu.memory_space<vmem>>, vector<8x324xbf16>
    tpu.vector_store %arg6[%c16, %c0_5], %6 {strides = array<i32>} : memref<72x324xbf16, #tpu.memory_space<vmem>>, vector<8x324xbf16>,
    %8 = vector.extract_strided_slice %1 {offsets = [0, 18], sizes = [8, 324], strides = [1, 1]} : vector<8x362xbf16> to vector<8x324xbf16>
    %c24 = arith.constant 24 : index
    %c0_6 = arith.constant 0 : index
    %9 = vector.load %arg6[%c24, %c0_6] : memref<72x324xbf16, #tpu.memory_space<vmem>>, vector<8x324xbf16>
    tpu.vector_store %arg6[%c24, %c0_6], %8 {strides = array<i32>} : memref<72x324xbf16, #tpu.memory_space<vmem>>, vector<8x324xbf16>,
    %10 = vector.extract_strided_slice %1 {offsets = [0, 19], sizes = [8, 324], strides = [1, 1]} : vector<8x362xbf16> to vector<8x324xbf16>
    %c32 = arith.constant 32 : index
    %c0_7 = arith.constant 0 : index
    %11 = vector.load %arg6[%c32, %c0_7] : memref<72x324xbf16, #tpu.memory_space<vmem>>, vector<8x324xbf16>
    tpu.vector_store %arg6[%c32, %c0_7], %10 {strides = array<i32>} : memref<72x324xbf16, #tpu.memory_space<vmem>>, vector<8x324xbf16>,
    %12 = vector.extract_strided_slice %1 {offsets = [0, 20], sizes = [8, 324], strides = [1, 1]} : vector<8x362xbf16> to vector<8x324xbf16>
    %c40 = arith.constant 40 : index
    %c0_8 = arith.constant 0 : index
    %13 = vector.load %arg6[%c40, %c0_8] : memref<72x324xbf16, #tpu.memory_space<vmem>>, vector<8x324xbf16>
    tpu.vector_store %arg6[%c40, %c0_8], %12 {strides = array<i32>} : memref<72x324xbf16, #tpu.memory_space<vmem>>, vector<8x324xbf16>,
    %14 = vector.extract_strided_slice %1 {offsets = [0, 36], sizes = [8, 324], strides = [1, 1]} : vector<8x362xbf16> to vector<8x324xbf16>
    %c48 = arith.constant 48 : index
    %c0_9 = arith.constant 0 : index
    %15 = vector.load %arg6[%c48, %c0_9] : memref<72x324xbf16, #tpu.memory_space<vmem>>, vector<8x324xbf16>
    tpu.vector_store %arg6[%c48, %c0_9], %14 {strides = array<i32>} : memref<72x324xbf16, #tpu.memory_space<vmem>>, vector<8x324xbf16>,
    %16 = vector.extract_strided_slice %1 {offsets = [0, 37], sizes = [8, 324], strides = [1, 1]} : vector<8x362xbf16> to vector<8x324xbf16>
    %c56 = arith.constant 56 : index
    %c0_10 = arith.constant 0 : index
    %17 = vector.load %arg6[%c56, %c0_10] : memref<72x324xbf16, #tpu.memory_space<vmem>>, vector<8x324xbf16>
    tpu.vector_store %arg6[%c56, %c0_10], %16 {strides = array<i32>} : memref<72x324xbf16, #tpu.memory_space<vmem>>, vector<8x324xbf16>,
    %18 = vector.extract_strided_slice %1 {offsets = [0, 38], sizes = [8, 324], strides = [1, 1]} : vector<8x362xbf16> to vector<8x324xbf16>
    %c64 = arith.constant 64 : index
    %c0_11 = arith.constant 0 : index
    %19 = vector.load %arg6[%c64, %c0_11] : memref<72x324xbf16, #tpu.memory_space<vmem>>, vector<8x324xbf16>
    tpu.vector_store %arg6[%c64, %c0_11], %18 {strides = array<i32>} : memref<72x324xbf16, #tpu.memory_space<vmem>>, vector<8x324xbf16>,
    %c0_12 = arith.constant 0 : index
    %c0_13 = arith.constant 0 : index
    %20 = vector.load %arg2[%c0_12, %c0_13] : memref<8x72xbf16, #tpu.memory_space<vmem>>, vector<8x72xbf16>
    %c0_14 = arith.constant 0 : index
    %c0_15 = arith.constant 0 : index
    %21 = vector.load %arg6[%c0_14, %c0_15] : memref<72x324xbf16, #tpu.memory_space<vmem>>, vector<72x324xbf16>
    %cst = arith.constant dense<0.000000e+00> : vector<8x324xf32>
    %22 = tpu.matmul %20, %21, %cst {dimension_numbers = #tpu.dot_dimension_numbers<[1], [0], [0], [1], [0, 0, 1, 1], [], []>} : vector<8x72xbf16>, vector<72x324xbf16>, vector<8x324xf32> -> vector<8x324xf32>
    %cst_16 = arith.constant 0.000000e+00 : f32
    %23 = vector.broadcast %cst_16 : f32 to vector<8x324xf32>
    %24 = arith.maximumf %22, %23 : vector<8x324xf32>
    %25 = arith.truncf %24 : vector<8x324xf32> to vector<8x324xbf16>
    %c0_17 = arith.constant 0 : index
    %c0_18 = arith.constant 0 : index
    %c0_19 = arith.constant 0 : index
    %26 = vector.load %arg4[%c0_17, %c0_18, %c0_19] : memref<1x8x324xbf16, #tpu.memory_space<vmem>>, vector<1x8x324xbf16>
    %27 = vector.shape_cast %26 : vector<1x8x324xbf16> to vector<8x324xbf16>
    %28 = vector.shape_cast %25 : vector<8x324xbf16> to vector<1x8x324xbf16>
    tpu.vector_store %arg4[%c0_17, %c0_18, %c0_19], %28 {strides = array<i32>} : memref<1x8x324xbf16, #tpu.memory_space<vmem>>, vector<1x8x324xbf16>,
    %c0_20 = arith.constant 0 : index
    %c0_21 = arith.constant 0 : index
    %29 = vector.load %arg3[%c0_20, %c0_21] : memref<1x324xf32, #tpu.memory_space<vmem>>, vector<1x324xf32>
    %30 = vector.broadcast %29 : vector<1x324xf32> to vector<8x324xf32>
    %31 = arith.mulf %24, %30 : vector<8x324xf32>
    %cst_22 = arith.constant dense<0.000000e+00> : vector<8xf32>
    %32 = vector.multi_reduction <add>, %31, %cst_22 [1] : vector<8x324xf32> to vector<8xf32>
    %33 = vector.shape_cast %32 : vector<8xf32> to vector<8x1xf32>
    %34 = arith.mulf %31, %24 : vector<8x324xf32>
    %cst_23 = arith.constant dense<0.000000e+00> : vector<8xf32>
    %35 = vector.multi_reduction <add>, %34, %cst_23 [1] : vector<8x324xf32> to vector<8xf32>
    %36 = vector.shape_cast %35 : vector<8xf32> to vector<8x1xf32>
    %37 = tpu.concatenate %33, %36 in 1 : vector<8x1xf32>, vector<8x1xf32> -> vector<8x2xf32>
    %c0_24 = arith.constant 0 : index
    %c0_25 = arith.constant 0 : index
    %c0_26 = arith.constant 0 : index
    %38 = vector.load %arg5[%c0_24, %c0_25, %c0_26] : memref<1x8x2xf32, #tpu.memory_space<vmem>>, vector<1x8x2xf32>
    %39 = vector.shape_cast %38 : vector<1x8x2xf32> to vector<8x2xf32>
    %40 = vector.shape_cast %37 : vector<8x2xf32> to vector<1x8x2xf32>
    tpu.vector_store %arg5[%c0_24, %c0_25, %c0_26], %40 {strides = array<i32>} : memref<1x8x2xf32, #tpu.memory_space<vmem>>, vector<1x8x2xf32>,
    return
  }
  func.func @transform_0(%arg0: i32) -> (i32, i32, i32) {
    %c0_i32 = arith.constant 0 : i32
    %c0_i32_0 = arith.constant 0 : i32
    %c0_i32_1 = arith.constant 0 : i32
    return %arg0, %c0_i32, %c0_i32_0 : i32, i32, i32
  }
  func.func @transform_1(%arg0: i32) -> (i32, i32) {
    %c0_i32 = arith.constant 0 : i32
    %c0_i32_0 = arith.constant 0 : i32
    %c0_i32_1 = arith.constant 0 : i32
    return %c0_i32, %c0_i32_0 : i32, i32
  }
  func.func @transform_2(%arg0: i32) -> (i32, i32) {
    %c0_i32 = arith.constant 0 : i32
    %c0_i32_0 = arith.constant 0 : i32
    %c0_i32_1 = arith.constant 0 : i32
    return %c0_i32, %c0_i32_0 : i32, i32
  }
  func.func @transform_3(%arg0: i32) -> (i32, i32, i32) {
    %c0_i32 = arith.constant 0 : i32
    %c0_i32_0 = arith.constant 0 : i32
    %c0_i32_1 = arith.constant 0 : i32
    return %arg0, %c0_i32, %c0_i32_0 : i32, i32, i32
  }
  func.func @transform_4(%arg0: i32) -> (i32, i32, i32) {
    %c0_i32 = arith.constant 0 : i32
    %c0_i32_0 = arith.constant 0 : i32
    %c0_i32_1 = arith.constant 0 : i32
    return %arg0, %c0_i32, %c0_i32_0 : i32, i32, i32
  }
}

</mosaic_0001>

<llo_original>
// kernel: tpu_custom_call.1
$region0: #{tpu_custom_call.1}
  #allocation0 [shape = 'u32[]', space=smem, size = 0x4, offset = 0x4, fixed_abs, tag = 'smem constant byte address 0x4 - core index']
  #allocation1 [shape = 'u32[144,128]{1,0:T(1,128)}', space=vmem, size = 0x12000, scoped, tag = 'internal scratch']
  #allocation2 [shape = 'bf16[72,324]{1,0:T(8,128)(2,1)}', space=vmem, size = 0xd800, scoped, tag = 'scratch operand']
  %s0 = inlined_call_operand.hbm [shape: bf16[2,8,362], index: 0, kind: input, shape index: {}]
  %s1 = inlined_call_operand.hbm [shape: bf16[8,72], index: 1, kind: input, shape index: {}]
  %s2 = inlined_call_operand.vmem [shape: f32[1,324], index: 2, kind: input, shape index: {}]
  %s3 = inlined_call_operand.hbm [shape: bf16[2,8,324], index: 3, kind: output, shape index: {0}]
  %s4 = inlined_call_operand.vmem [shape: f32[2,8,2], index: 4, kind: output, shape index: {1}]
  %5 = xla_tuple %s3, %s4
  %s6 = sld [smem:[#allocation0]]
  $region61: #{tpu_custom_call.1} parent=0
    _
  %s8 = ssub.s32 1, %s6
  %s9 = scalar_select 0, %s8, %s6
  $region1: #{tpu_custom_call.1} parent=0
    #allocation3 [shape = 'u8[12288]{0}', space=vmem, size = 0x3000, scoped, tag = 'input window, operand 0']
    #allocation4 [shape = 's32[2]{0}', space=sflag, size = 0x8, scoped, tag = 'scoped memory for tpu_custom_call.1']
    #allocation5 [shape = 's32[2]{0}', space=sflag, size = 0x8, scoped, tag = 'scoped memory for tpu_custom_call.1']
    #allocation6 [shape = 'u8[2048]{0}', space=vmem, size = 0x800, scoped, tag = 'input window, operand 1, single buffered']
    #allocation7 [shape = 's32[1]{0}', space=sflag, size = 0x4, scoped, tag = 'scoped memory for tpu_custom_call.1']
    #allocation8 [shape = 'u8[12288]{0}', space=vmem, size = 0x3000, scoped, tag = 'output window, operand 0']
    %10 = vsyncpa [#allocation4], 0
    %s11 = scalar_lea.sflag [#allocation4], 1
    %12 = vsyncpa %s11, 0
    %13 = vsyncpa [#allocation7], 0
    %14 = vsyncpa [#allocation5], 0
    %s15 = scalar_lea.sflag [#allocation5], 1
    %16 = vsyncpa %s15, 0
    loop: start=0, step=1, limit=4
    $region2: #{tpu_custom_call.1} parent=1 // loop_pre_header
      _
    $region3: #{tpu_custom_call.1} parent=1 // loop_header
      %s18 = sphi 0, %s22
      %p19 = scmp.ge.s32.totalorder %s18, 4
      %s28 = sphi 0, %s30
      %s31 = sphi 0, %s28
      %s32 = sphi 0, %s31
      %s48 = sphi 0, %s32
      %s52 = sphi 0, %s52
      %s54 = sphi 0, %s52
      %s55 = sphi 0, %s54
      %s69 = sphi 0, %s55
      %s73 = sphi 0, %s73
      %s75 = sphi 0, %s73
      %s76 = sphi 0, %s75
      %s90 = sphi 0, %s76
      %s96 = sphi 0, %s98
      %s99 = sphi 0, %s96
      %s100 = sphi 0, %s99
      %s116 = sphi 0, %s100
      %s122 = sphi 0, %s124
      %s125 = sphi 0, %s122
      %s126 = sphi 0, %s125
      %s142 = sphi 0, %s126
    $region4: #{tpu_custom_call.1} parent=1 // loop_header_branch
      %21 = sbr.rel (%p19) target = $region8
    $region5: #{tpu_custom_call.1} parent=1 // loop_body
      %s23 = ssub.s32 %s18, 1
      %s24 = ssub.s32 %s18, 2
      %s25 = sadd.s32 %s18, 1
      %s26 = ssub.s32 %s18, %s25
      %p27 = scmp.eq.s32.totalorder %s26, 0
      %s29 = sadd.s32 %s28, 1
      %s30 = scalar_select %p27, %s28, %s29
      %p33 = pneg %p27
      %p34 = scmp.eq.s32.totalorder %s18, 1
      %p35 = por %p33, %p34
      %p36 = scmp.ne.s32.totalorder %s28, %s31
      %p37 = scmp.eq.s32.totalorder %s18, 0
      %p38 = por %p36, %p37
      %p39 = scmp.ne.s32.totalorder %s28, %s31
      %p40 = scmp.eq.s32.totalorder %s23, 1
      %p41 = por %p39, %p40
      %p42 = scmp.ne.s32.totalorder %s31, %s32
      %p43 = scmp.eq.s32.totalorder %s23, 0
      %p44 = por %p42, %p43
      %p45 = scmp.ne.s32.totalorder %s31, %s32
      %p46 = scmp.eq.s32.totalorder %s24, 1
      %p47 = por %p45, %p46
      %p49 = scmp.ne.s32.totalorder %s32, %s48
      %p50 = scmp.eq.s32.totalorder %s24, 0
      %p51 = por %p49, %p50
      %s53 = sadd.s32 %s52, 1
      %p56 = scmp.eq.s32.totalorder %s18, 1
      %p57 = scmp.ne.s32.totalorder %s52, %s54
      %p58 = scmp.eq.s32.totalorder %s18, 0
      %p59 = por %p57, %p58
      %p60 = scmp.ne.s32.totalorder %s52, %s54
      %p61 = scmp.eq.s32.totalorder %s23, 1
      %p62 = por %p60, %p61
      %p63 = scmp.ne.s32.totalorder %s54, %s55
      %p64 = scmp.eq.s32.totalorder %s23, 0
      %p65 = por %p63, %p64
      %p66 = scmp.ne.s32.totalorder %s54, %s55
      %p67 = scmp.eq.s32.totalorder %s24, 1
      %p68 = por %p66, %p67
      %p70 = scmp.ne.s32.totalorder %s55, %s69
      %p71 = scmp.eq.s32.totalorder %s24, 0
      %p72 = por %p70, %p71
      %s74 = sadd.s32 %s73, 1
      %p77 = scmp.eq.s32.totalorder %s18, 1
      %p78 = scmp.ne.s32.totalorder %s73, %s75
      %p79 = scmp.eq.s32.totalorder %s18, 0
      %p80 = por %p78, %p79
      %p81 = scmp.ne.s32.totalorder %s73, %s75
      %p82 = scmp.eq.s32.totalorder %s23, 1
      %p83 = por %p81, %p82
      %p84 = scmp.ne.s32.totalorder %s75, %s76
      %p85 = scmp.eq.s32.totalorder %s23, 0
      %p86 = por %p84, %p85
      %p87 = scmp.ne.s32.totalorder %s75, %s76
      %p88 = scmp.eq.s32.totalorder %s24, 1
      %p89 = por %p87, %p88
      %p91 = scmp.ne.s32.totalorder %s76, %s90
      %p92 = scmp.eq.s32.totalorder %s24, 0
      %p93 = por %p91, %p92
      %s94 = ssub.s32 %s18, %s25
      %p95 = scmp.eq.s32.totalorder %s94, 0
      %s97 = sadd.s32 %s96, 1
      %s98 = scalar_select %p95, %s96, %s97
      %p101 = pneg %p95
      %p102 = scmp.eq.s32.totalorder %s18, 1
      %p103 = por %p101, %p102
      %p104 = scmp.ne.s32.totalorder %s96, %s99
      %p105 = scmp.eq.s32.totalorder %s18, 0
      %p106 = por %p104, %p105
      %p107 = scmp.ne.s32.totalorder %s96, %s99
      %p108 = scmp.eq.s32.totalorder %s23, 1
      %p109 = por %p107, %p108
      %p110 = scmp.ne.s32.totalorder %s99, %s100
      %p111 = scmp.eq.s32.totalorder %s23, 0
      %p112 = por %p110, %p111
      %p113 = scmp.ne.s32.totalorder %s99, %s100
      %p114 = scmp.eq.s32.totalorder %s24, 1
      %p115 = por %p113, %p114
      %p117 = scmp.ne.s32.totalorder %s100, %s116
      %p118 = scmp.eq.s32.totalorder %s24, 0
      %p119 = por %p117, %p118
      %s120 = ssub.s32 %s18, %s25
      %p121 = scmp.eq.s32.totalorder %s120, 0
      %s123 = sadd.s32 %s122, 1
      %s124 = scalar_select %p121, %s122, %s123
      %p127 = pneg %p121
      %p128 = scmp.eq.s32.totalorder %s18, 1
      %p129 = por %p127, %p128
      %p130 = scmp.ne.s32.totalorder %s122, %s125
      %p131 = scmp.eq.s32.totalorder %s18, 0
      %p132 = por %p130, %p131
      %p133 = scmp.ne.s32.totalorder %s122, %s125
      %p134 = scmp.eq.s32.totalorder %s23, 1
      %p135 = por %p133, %p134
      %p136 = scmp.ne.s32.totalorder %s125, %s126
      %p137 = scmp.eq.s32.totalorder %s23, 0
      %p138 = por %p136, %p137
      %p139 = scmp.ne.s32.totalorder %s125, %s126
      %p140 = scmp.eq.s32.totalorder %s24, 1
      %p141 = por %p139, %p140
      %p143 = scmp.ne.s32.totalorder %s126, %s142
      %p144 = scmp.eq.s32.totalorder %s24, 0
      %p145 = por %p143, %p144
      %p146 = scmp.le.s32.totalorder 1, %s18
      %p147 = scmp.lt.s32.totalorder %s18, 3
      %p148 = pnand %p146, %p147
      %p149 = pneg %p148
      // Predicated region
      $region9: #{tpu_custom_call.1} parent=5 // pred_check
        _
      $region10: #{tpu_custom_call.1} parent=5 // pred_check_branch
        %151 = sbr.rel (%p148) target = $region12
      $region11: #{tpu_custom_call.1} parent=5 // pred_region
        %s152 = ssub.s32 %s18, 1
        // Predicated region
        $region13: #{tpu_custom_call.1} parent=11 // pred_check
          %p153 = pneg %p65
        $region14: #{tpu_custom_call.1} parent=11 // pred_check_branch
          %155 = sbr.rel (%p153) target = $region16
        $region15: #{tpu_custom_call.1} parent=11 // pred_region
          %s157 = ssub.s32 64, 64
          %158 = vsyncadd [#allocation7], %s157
          %s160 = sshll.u32 [#allocation6], 4
          %s161 = int_to_ptr.vmem [resolvable:$true] %s160
          %163 = dma.hbm_to_vmem [thread:$0]  %s1, 64, %s161, [#allocation7]
        $region16: #{tpu_custom_call.1} parent=11 // pred_fallthru
          _
        // Predicated region
        $region17: #{tpu_custom_call.1} parent=11 // pred_check
          %p164 = pneg %p86
        $region18: #{tpu_custom_call.1} parent=11 // pred_check_branch
          %166 = sbr.rel (%p164) target = $region20
        $region19: #{tpu_custom_call.1} parent=11 // pred_region
          _
        $region20: #{tpu_custom_call.1} parent=11 // pred_fallthru
          _
      $region12: #{tpu_custom_call.1} parent=5 // pred_fallthru
        _
      %p167 = scmp.lt.s32.totalorder %s18, 2
      // Predicated region
      $region21: #{tpu_custom_call.1} parent=5 // pred_check
        %p168 = pneg %p167
      $region22: #{tpu_custom_call.1} parent=5 // pred_check_branch
        %170 = sbr.rel (%p168) target = $region24
      $region23: #{tpu_custom_call.1} parent=5 // pred_region
        // Predicated region
        $region25: #{tpu_custom_call.1} parent=23 // pred_check
          %p171 = pneg %p38
        $region26: #{tpu_custom_call.1} parent=23 // pred_check_branch
          %173 = sbr.rel (%p171) target = $region28
        $region27: #{tpu_custom_call.1} parent=23 // pred_region
          %s174 = sand.u32 %s28, 1
          %s175 = scalar_lea.sflag [#allocation4], %s174
          %s176 = sand.u32 %s28, 1
          %s177 = smul.addr %s176, 12
          %s178 = scalar_lea.vmem [#allocation3], %s177
          %s180 = ssub.s32 192, 192
          %181 = vsyncadd %s175, %s180
          %s182 = smul.addr %s18, 3
          %s183 = smul.addr %s182, 64
          %s184 = scalar_lea.hbm %s0, %s183
          %s186 = sshll.u32 %s178, 4
          %s187 = int_to_ptr.vmem [resolvable:$true] %s186
          %189 = dma.hbm_to_vmem [thread:$0]  %s184, 192, %s187, %s175
        $region28: #{tpu_custom_call.1} parent=23 // pred_fallthru
          _
      $region24: #{tpu_custom_call.1} parent=5 // pred_fallthru
        _
      %p190 = scmp.le.s32.totalorder 1, %s18
      %p191 = scmp.lt.s32.totalorder %s18, 3
      %p192 = pnand %p190, %p191
      %p193 = pneg %p192
      // Predicated region
      $region29: #{tpu_custom_call.1} parent=5 // pred_check
        _
      $region30: #{tpu_custom_call.1} parent=5 // pred_check_branch
        %195 = sbr.rel (%p192) target = $region32
      $region31: #{tpu_custom_call.1} parent=5 // pred_region
        %s196 = ssub.s32 %s18, 1
        %s197 = sand.u32 %s31, 1
        %s198 = scalar_lea.sflag [#allocation4], %s197
        %s199 = sand.u32 %s31, 1
        %s200 = smul.addr %s199, 12
        %s201 = scalar_lea.vmem [#allocation3], %s200
        // Predicated region
        $region33: #{tpu_custom_call.1} parent=31 // pred_check
          %p202 = pneg %p44
        $region34: #{tpu_custom_call.1} parent=31 // pred_check_branch
          %204 = sbr.rel (%p202) target = $region36
        $region35: #{tpu_custom_call.1} parent=31 // pred_region
          %205 = dma.done %s198, 192
        $region36: #{tpu_custom_call.1} parent=31 // pred_fallthru
          _
        // Predicated region
        $region37: #{tpu_custom_call.1} parent=31 // pred_check
          %p206 = pneg %p65
        $region38: #{tpu_custom_call.1} parent=31 // pred_check_branch
          %208 = sbr.rel (%p206) target = $region40
        $region39: #{tpu_custom_call.1} parent=31 // pred_region
          %209 = dma.done [#allocation7], 64
        $region40: #{tpu_custom_call.1} parent=31 // pred_fallthru
          _
        %s210 = sand.u32 %s31, 1
        %s211 = scalar_lea.sflag [#allocation4], %s210
        %s212 = sand.u32 %s31, 1
        %s213 = smul.addr %s212, 12
        %s214 = scalar_lea.vmem [#allocation3], %s213
        %p215 = pneg %p44
        %p216 = pneg %p41
        %p217 = pneg %p65
        %p218 = pneg %p62
        %p219 = pneg %p86
        %p220 = pneg %p83
        %p221 = pneg %p112
        %p222 = pneg %p109
        %s223 = sand.u32 %s99, 1
        %s224 = scalar_lea.sflag [#allocation5], %s223
        %s225 = sand.u32 %s99, 1
        %s226 = smul.addr %s225, 12
        %s227 = scalar_lea.vmem [#allocation8], %s226
        %p228 = pneg %p138
        %p229 = pneg %p135
        %p230 = scmp.lt.s32.totalorder %s23, 1
        %s231 = scalar_select %p230, %s23, 1
        %s232 = smul.addr %s231, 8
        %s233 = scalar_lea.vmem %s4, %s232
        %p234 = scmp.lt.s32.totalorder %s23, 1
        %s235 = scalar_select %p234, %s23, 1
        %s236 = smul.addr %s235, 8
        %s237 = scalar_lea.vmem %s4, %s236
        %v239 = vld [vmem:[%s201] sm:$0xff]
        %v240 = vld [vmem:[%s201 + $0x8] sm:$0xf]
        %241 = vst [vmem:[#allocation2] sm:$0xff] %v239
        %vm242 = vcmask 551936
        %243 = vst.msk [vmem:[#allocation2 + $0x8] sm:$0xf] %vm242, %v240
        %246 = vrot.lane.b32.xlu0 %v239, 127
        %v247 = vpop.permute.xlu0 %246
        %248 = vrot.lane.b32.xlu0 %v240, 127
        %v249 = vpop.permute.xlu0 %248
        %v250 = vrot.slane %v247, 4
        %v251 = vrot.slane %v249, 4
        %vm252 = vcmask 1043456
        %v253 = vsel %vm252, %v250, %v251
        %vm254 = vcmask 1039360
        %v255 = vsel %vm254, %v247, %v253
        %258 = vst [vmem:[#allocation2 + $0xc] sm:$0xff] %v255
        %259 = vst.msk [vmem:[#allocation2 + $0x14] sm:$0xf] %vm242, %v249
        %260 = vrot.lane.b32.xlu0 %v239, 126
        %v261 = vpop.permute.xlu0 %260
        %262 = vrot.lane.b32.xlu0 %v240, 126
        %v263 = vpop.permute.xlu0 %262
        %v264 = vrot.slane %v261, 4
        %v265 = vrot.slane %v263, 4
        %v266 = vsel %vm252, %v264, %v265
        %vm267 = vcmask 1031168
        %v268 = vsel %vm267, %v261, %v266
        %271 = vst [vmem:[#allocation2 + $0x18] sm:$0xff] %v268
        %272 = vst.msk [vmem:[#allocation2 + $0x20] sm:$0xf] %vm242, %v263
        %273 = vrot.lane.b32.xlu0 %v239, 110
        %v274 = vpop.permute.xlu0 %273
        %275 = vrot.lane.b32.xlu0 %v240, 110
        %v276 = vpop.permute.xlu0 %275
        %v277 = vrot.slane %v274, 4
        %v278 = vrot.slane %v276, 4
        %v279 = vsel %vm252, %v277, %v278
        %vm280 = vcmask 900096
        %v281 = vsel %vm280, %v274, %v279
        %284 = vst [vmem:[#allocation2 + $0x24] sm:$0xff] %v281
        %285 = vst.msk [vmem:[#allocation2 + $0x2c] sm:$0xf] %vm242, %v276
        %286 = vrot.lane.b32.xlu0 %v239, 109
        %v287 = vpop.permute.xlu0 %286
        %288 = vrot.lane.b32.xlu0 %v240, 109
        %v289 = vpop.permute.xlu0 %288
        %v290 = vrot.slane %v287, 4
        %v291 = vrot.slane %v289, 4
        %v292 = vsel %vm252, %v290, %v291
        %vm293 = vcmask 891904
        %v294 = vsel %vm293, %v287, %v292
        %297 = vst [vmem:[#allocation2 + $0x30] sm:$0xff] %v294
        %298 = vst.msk [vmem:[#allocation2 + $0x38] sm:$0xf] %vm242, %v289
        %299 = vrot.lane.b32.xlu0 %v239, 108
        %v300 = vpop.permute.xlu0 %299
        %301 = vrot.lane.b32.xlu0 %v240, 108
        %v302 = vpop.permute.xlu0 %301
        %v303 = vrot.slane %v300, 4
        %v304 = vrot.slane %v302, 4
        %v305 = vsel %vm252, %v303, %v304
        %vm306 = vcmask 883712
        %v307 = vsel %vm306, %v300, %v305
        %310 = vst [vmem:[#allocation2 + $0x3c] sm:$0xff] %v307
        %311 = vst.msk [vmem:[#allocation2 + $0x44] sm:$0xf] %vm242, %v302
        %312 = vrot.lane.b32.xlu0 %v239, 92
        %v313 = vpop.permute.xlu0 %312
        %314 = vrot.lane.b32.xlu0 %v240, 92
        %v315 = vpop.permute.xlu0 %314
        %v316 = vrot.slane %v313, 4
        %v317 = vrot.slane %v315, 4
        %v318 = vsel %vm252, %v316, %v317
        %vm319 = vcmask 752640
        %v320 = vsel %vm319, %v313, %v318
        %323 = vst [vmem:[#allocation2 + $0x48] sm:$0xff] %v320
        %324 = vst.msk [vmem:[#allocation2 + $0x50] sm:$0xf] %vm242, %v315
        %325 = vrot.lane.b32.xlu0 %v239, 91
        %v326 = vpop.permute.xlu0 %325
        %327 = vrot.lane.b32.xlu0 %v240, 91
        %v328 = vpop.permute.xlu0 %327
        %v329 = vrot.slane %v326, 4
        %v330 = vrot.slane %v328, 4
        %v331 = vsel %vm252, %v329, %v330
        %vm332 = vcmask 744448
        %v333 = vsel %vm332, %v326, %v331
        %336 = vst [vmem:[#allocation2 + $0x54] sm:$0xff] %v333
        %337 = vst.msk [vmem:[#allocation2 + $0x5c] sm:$0xf] %vm242, %v328
        %338 = vrot.lane.b32.xlu0 %v239, 90
        %v339 = vpop.permute.xlu0 %338
        %340 = vrot.lane.b32.xlu0 %v240, 90
        %v341 = vpop.permute.xlu0 %340
        %v342 = vrot.slane %v339, 4
        %v343 = vrot.slane %v341, 4
        %v344 = vsel %vm252, %v342, %v343
        %vm345 = vcmask 736256
        %v346 = vsel %vm345, %v339, %v344
        %349 = vst [vmem:[#allocation2 + $0x60] sm:$0xff] %v346
        %350 = vst.msk [vmem:[#allocation2 + $0x68] sm:$0xf] %vm242, %v341
        %v351 = vld [vmem:[#allocation6] sm:$0xf]
        %v352 = vld [vmem:[#allocation2] sm:$0xff]
        %v353 = vld [vmem:[#allocation2 + $0x8] sm:$0xf]
        %v354 = vld [vmem:[#allocation2 + $0xc] sm:$0xff]
        %v355 = vld [vmem:[#allocation2 + $0x14] sm:$0xf]
        %v356 = vld [vmem:[#allocation2 + $0x18] sm:$0xff]
        %v357 = vld [vmem:[#allocation2 + $0x20] sm:$0xf]
        %v358 = vld [vmem:[#allocation2 + $0x24] sm:$0xff]
        %v359 = vld [vmem:[#allocation2 + $0x2c] sm:$0xf]
        %v360 = vld [vmem:[#allocation2 + $0x30] sm:$0xff]
        %v361 = vld [vmem:[#allocation2 + $0x38] sm:$0xf]
        %v362 = vld [vmem:[#allocation2 + $0x3c] sm:$0xff]
        %v363 = vld [vmem:[#allocation2 + $0x44] sm:$0xf]
        %v364 = vld [vmem:[#allocation2 + $0x48] sm:$0xff]
        %v365 = vld [vmem:[#allocation2 + $0x50] sm:$0xf]
        %v366 = vld [vmem:[#allocation2 + $0x54] sm:$0xff]
        %v367 = vld [vmem:[#allocation2 + $0x5c] sm:$0xf]
        %v368 = vld [vmem:[#allocation2 + $0x60] sm:$0xff]
        %v369 = vld [vmem:[#allocation2 + $0x68] sm:$0xf]
        %v388 = vunpack.c.l.b16 %v352
        %v389 = vunpack.c.h.b16 %v352
        %v390 = vunpack.c.l.b16 %v353
        %v391 = vunpack.c.l.b16 %v354
        %v392 = vunpack.c.h.b16 %v354
        %v393 = vunpack.c.l.b16 %v355
        %v394 = vunpack.c.l.b16 %v356
        %v395 = vunpack.c.h.b16 %v356
        %v396 = vunpack.c.l.b16 %v357
        %v397 = vunpack.c.l.b16 %v358
        %v398 = vunpack.c.h.b16 %v358
        %v399 = vunpack.c.l.b16 %v359
        %v400 = vunpack.c.l.b16 %v360
        %v401 = vunpack.c.h.b16 %v360
        %v402 = vunpack.c.l.b16 %v361
        %v403 = vunpack.c.l.b16 %v362
        %v404 = vunpack.c.h.b16 %v362
        %v405 = vunpack.c.l.b16 %v363
        %v406 = vunpack.c.l.b16 %v364
        %v407 = vunpack.c.h.b16 %v364
        %v408 = vunpack.c.l.b16 %v365
        %v409 = vunpack.c.l.b16 %v366
        %v410 = vunpack.c.h.b16 %v366
        %v411 = vunpack.c.l.b16 %v367
        %v412 = vunpack.c.l.b16 %v368
        %v413 = vunpack.c.h.b16 %v368
        %v414 = vunpack.c.l.b16 %v369
        %v415 = vpack.c.b16 %v391, %v388
        %v416 = vpack.c.b16 %v392, %v389
        %v417 = vpack.c.b16 %v393, %v390
        %v418 = vpack.c.b16 %v397, %v394
        %v419 = vpack.c.b16 %v398, %v395
        %v420 = vpack.c.b16 %v399, %v396
        %v421 = vpack.c.b16 %v403, %v400
        %v422 = vpack.c.b16 %v404, %v401
        %v423 = vpack.c.b16 %v405, %v402
        %v424 = vpack.c.b16 %v409, %v406
        %v425 = vpack.c.b16 %v410, %v407
        %v426 = vpack.c.b16 %v411, %v408
        %v427 = vpack.c.b16 %v412, %v412
        %v428 = vpack.c.b16 %v413, %v413
        %v429 = vpack.c.b16 %v414, %v414
        %vm442 = vcmask 588800
        %v444 = vsel %vm442, %v351, 0
        %vm446 = vcmask 1043456
        %v448 = vsel %vm446, %v427, 0
        %v451 = vsel %vm446, %v428, 0
        %v454 = vsel %vm446, %v429, 0
        %456 = vmatprep.subr.bf16.mxu0 0
        %457 = vmatpush1.bf16.msra.mxu0 0
        %458 = vmatprep.subr.bf16.mxu0 0
        %459 = vmatpush1.bf16.msra.mxu0 0
        %460 = vmatprep.subr.bf16.mxu0 0
        %461 = vmatpush1.bf16.msra.mxu0 0
        %462 = vmatprep.subr.bf16.mxu0 %v451
        %463 = vmatpush1.bf16.msra.mxu0 %v448
        %464 = vmatprep.subr.bf16.mxu0 %v425
        %465 = vmatpush1.bf16.msra.mxu0 %v424
        %466 = vmatprep.subr.bf16.mxu0 %v422
        %467 = vmatpush1.bf16.msra.mxu0 %v421
        %468 = vmatprep.subr.bf16.mxu0 %v419
        %469 = vmatpush1.bf16.msra.mxu0 %v418
        %470 = vmatprep.subr.bf16.mxu0 %v416
        %471 = vmatpush1.bf16.msra.mxu0 %v415
        %472 = vmatprep.subr.bf16.mxu0 0
        %473 = vmatpush2.bf16.msra.mxu0 0
        %474 = vmatprep.subr.bf16.mxu0 0
        %475 = vmatpush2.bf16.msra.mxu0 0
        %476 = vmatprep.subr.bf16.mxu0 0
        %477 = vmatpush2.bf16.msra.mxu0 0
        %478 = vmatprep.subr.bf16.mxu0 0
        %479 = vmatpush2.bf16.msra.mxu0 0
        %480 = vmatprep.subr.bf16.mxu0 0
        %481 = vmatpush2.bf16.msra.mxu0 0
        %482 = vmatprep.subr.bf16.mxu0 0
        %483 = vmatpush2.bf16.msra.mxu0 0
        %484 = vmatprep.subr.bf16.mxu0 0
        %485 = vmatpush2.bf16.msra.mxu0 0
        %486 = vmatprep.subr.bf16.mxu0 0
        %487 = vmatpush2.bf16.msra.mxu0 0
        %488 = vmatprep.mubr.bf16.mxu0 0
        %489 = vmatmul.mubr.bf16.gmra.mxu0 %v444
        %v490 = vpop.f32.mrf.mxu0
        %v491 = vadd.f32 0.0, %v490
        %v492 = vpop.f32.mrf.mxu0
        %v493 = vadd.f32 0.0, %v492
        %v494 = vpop.f32.mrf.mxu0
        %v495 = vpop.f32.mrf.mxu0
        %496 = vdwg.mxu0
        %497 = vmatprep.subr.bf16.mxu0 0
        %498 = vmatpush1.bf16.msra.mxu0 0
        %499 = vmatprep.subr.bf16.mxu0 0
        %500 = vmatpush1.bf16.msra.mxu0 0
        %501 = vmatprep.subr.bf16.mxu0 0
        %502 = vmatpush1.bf16.msra.mxu0 0
        %503 = vmatprep.subr.bf16.mxu0 0
        %504 = vmatpush1.bf16.msra.mxu0 %v454
        %505 = vmatprep.subr.bf16.mxu0 0
        %506 = vmatpush1.bf16.msra.mxu0 %v426
        %507 = vmatprep.subr.bf16.mxu0 0
        %508 = vmatpush1.bf16.msra.mxu0 %v423
        %509 = vmatprep.subr.bf16.mxu0 0
        %510 = vmatpush1.bf16.msra.mxu0 %v420
        %511 = vmatprep.subr.bf16.mxu0 0
        %512 = vmatpush1.bf16.msra.mxu0 %v417
        %513 = vmatprep.subr.bf16.mxu0 0
        %514 = vmatpush2.bf16.msra.mxu0 0
        %515 = vmatprep.subr.bf16.mxu0 0
        %516 = vmatpush2.bf16.msra.mxu0 0
        %517 = vmatprep.subr.bf16.mxu0 0
        %518 = vmatpush2.bf16.msra.mxu0 0
        %519 = vmatprep.subr.bf16.mxu0 0
        %520 = vmatpush2.bf16.msra.mxu0 0
        %521 = vmatprep.subr.bf16.mxu0 0
        %522 = vmatpush2.bf16.msra.mxu0 0
        %523 = vmatprep.subr.bf16.mxu0 0
        %524 = vmatpush2.bf16.msra.mxu0 0
        %525 = vmatprep.subr.bf16.mxu0 0
        %526 = vmatpush2.bf16.msra.mxu0 0
        %527 = vmatprep.subr.bf16.mxu0 0
        %528 = vmatpush2.bf16.msra.mxu0 0
        %529 = vmatprep.mubr.bf16.mxu0 0
        %530 = vmatmul.mubr.bf16.gmra.mxu0 %v444
        %v531 = vpop.f32.mrf.mxu0
        %v532 = vadd.f32 0.0, %v531
        %v533 = vpop.f32.mrf.mxu0
        %v534 = vpop.f32.mrf.mxu0
        %v535 = vpop.f32.mrf.mxu0
        %536 = vdwg.mxu0
        %v537 = vmax.f32 %v491, 0.0
        %v538 = vmax.f32 %v493, 0.0
        %v539 = vmax.f32 %v532, 0.0
        %v540 = vpack.c.bf16 %v537, %v537
        %v541 = vpack.c.bf16 %v538, %v538
        %v542 = vpack.c.bf16 %v539, %v539
        %v546 = vunpack.c.l.b16 %v540
        %v547 = vunpack.c.l.b16 %v541
        %v548 = vunpack.c.l.b16 %v542
        %v549 = vpack.c.b16 %v547, %v546
        %v550 = vpack.c.b16 %v548, %v548
        %553 = vst [vmem:[%s227] sm:$0xff] %v549
        %554 = vst.msk [vmem:[%s227 + $0x8] sm:$0xf] %vm242, %v550
        %v555 = vld [vmem:[%s2] sm:$0x7]
        %v557 = vlaneseq
        %v558 = vshrl.u32 %v557, 7
        %v559 = vsub.s32 0, %v558
        %v560 = vrot.slane %v555, %v559
        %v561 = vlaneseq
        %v562 = vshrl.u32 %v561, 7
        %v563 = vsub.s32 1, %v562
        %v564 = vrot.slane %v555, %v563
        %v565 = vlaneseq
        %v566 = vshrl.u32 %v565, 7
        %v567 = vsub.s32 2, %v566
        %v568 = vrot.slane %v555, %v567
        %v572 = vmul.f32 %v537, %v560
        %v573 = vmul.f32 %v538, %v564
        %v574 = vmul.f32 %v539, %v568
        %v575 = vadd.f32 %v572, %v573
        %vm576 = vcmask 556032
        %v577 = vsel %vm576, %v574, 0.0
        %v578 = vadd.f32 %v575, %v577
        %579 = vadd.xlane.f32.xlu0 %v578
        %v580 = vpop.xlane.xlu0 %579
        %v581 = vmul.f32 %v572, %v537
        %v582 = vmul.f32 %v573, %v538
        %v583 = vmul.f32 %v574, %v539
        %v584 = vadd.f32 %v581, %v582
        %v585 = vsel %vm576, %v583, 0.0
        %v586 = vadd.f32 %v584, %v585
        %587 = vadd.xlane.f32.xlu0 %v586
        %v588 = vpop.xlane.xlu0 %587
        %vm589 = vcmask 7168
        %v590 = vsel %vm589, %v580, %v588
        %vm591 = vcmask 15360
        %592 = vst.msk [vmem:[%s237] sm:$0xff] %vm591, %v590
        %s593 = sand.u32 %s99, 1
        %s594 = scalar_lea.sflag [#allocation5], %s593
        %s595 = sand.u32 %s99, 1
        %s596 = smul.addr %s595, 12
        %s597 = scalar_lea.vmem [#allocation8], %s596
        %p598 = scmp.lt.s32.totalorder %s23, 1
        %s599 = scalar_select %p598, %s23, 1
        %s600 = smul.addr %s599, 8
        %s601 = scalar_lea.vmem %s4, %s600
        // Predicated region
        $region41: #{tpu_custom_call.1} parent=31 // pred_check
          %p602 = pneg %p109
        $region42: #{tpu_custom_call.1} parent=31 // pred_check_branch
          %604 = sbr.rel (%p602) target = $region44
        $region43: #{tpu_custom_call.1} parent=31 // pred_region
          %s606 = ssub.s32 192, 192
          %607 = vsyncadd %s594, %s606
          %s608 = smul.addr %s23, 3
          %s609 = smul.addr %s608, 64
          %s610 = scalar_lea.hbm %s3, %s609
          %s612 = sshll.u32 %s597, 4
          %s613 = int_to_ptr.vmem [resolvable:$true] %s612
          %615 = dma.vmem_to_hbm [thread:$0]  %s613, 192, %s610, %s594
        $region44: #{tpu_custom_call.1} parent=31 // pred_fallthru
          _
        // Predicated region
        $region45: #{tpu_custom_call.1} parent=31 // pred_check
          %p616 = pneg %p135
        $region46: #{tpu_custom_call.1} parent=31 // pred_check_branch
          %618 = sbr.rel (%p616) target = $region48
        $region47: #{tpu_custom_call.1} parent=31 // pred_region
          _
        $region48: #{tpu_custom_call.1} parent=31 // pred_fallthru
          _
      $region32: #{tpu_custom_call.1} parent=5 // pred_fallthru
        _
      %p619 = scmp.le.s32.totalorder 2, %s18
      // Predicated region
      $region49: #{tpu_custom_call.1} parent=5 // pred_check
        %p620 = pneg %p619
      $region50: #{tpu_custom_call.1} parent=5 // pred_check_branch
        %622 = sbr.rel (%p620) target = $region52
      $region51: #{tpu_custom_call.1} parent=5 // pred_region
        %s623 = ssub.s32 %s18, 2
        // Predicated region
        $region53: #{tpu_custom_call.1} parent=51 // pred_check
          %p624 = pneg %p115
        $region54: #{tpu_custom_call.1} parent=51 // pred_check_branch
          %626 = sbr.rel (%p624) target = $region56
        $region55: #{tpu_custom_call.1} parent=51 // pred_region
          %s627 = sand.u32 %s100, 1
          %s628 = scalar_lea.sflag [#allocation5], %s627
          %s629 = sand.u32 %s100, 1
          %s630 = smul.addr %s629, 12
          %s631 = scalar_lea.vmem [#allocation8], %s630
          %632 = dma.done %s628, 192
        $region56: #{tpu_custom_call.1} parent=51 // pred_fallthru
          _
        // Predicated region
        $region57: #{tpu_custom_call.1} parent=51 // pred_check
          %p633 = pneg %p141
        $region58: #{tpu_custom_call.1} parent=51 // pred_check_branch
          %635 = sbr.rel (%p633) target = $region60
        $region59: #{tpu_custom_call.1} parent=51 // pred_region
          %p636 = scmp.lt.s32.totalorder %s24, 1
          %s637 = scalar_select %p636, %s24, 1
          %s638 = smul.addr %s637, 8
          %s639 = scalar_lea.vmem %s4, %s638
        $region60: #{tpu_custom_call.1} parent=51 // pred_fallthru
          _
      $region52: #{tpu_custom_call.1} parent=5 // pred_fallthru
        _
    $region6: #{tpu_custom_call.1} parent=1 // loop_footer
      %s22 = sadd.s32 1, %s18
    $region7: #{tpu_custom_call.1} parent=1 // loop_footer_branch
      %17 = sbr.rel target = $region3
    $region8: #{tpu_custom_call.1} parent=1 // loop_exit
      _
    %640 = vsyncpa [#allocation4], 1
    %s641 = scalar_lea.sflag [#allocation4], 1
    %642 = vsyncpa %s641, 1
    %643 = vsyncpa [#allocation7], 1
    %644 = vsyncpa [#allocation5], 1
    %s645 = scalar_lea.sflag [#allocation5], 1
    %646 = vsyncpa %s645, 1

</llo_original>
